<compile_context>
chip_gen: v5e
topology: v5e:2x2
jax: 0.10.0
libtpu: 0.0.40
codegen_flags: <defaults>
</compile_context>

<pallas_src>
import jax
import jax.numpy as jnp
from jax.experimental import pallas as pl
from jax.experimental.pallas import tpu as pltpu


def _cdiv(a, b):
    return (a + b - 1) // b


def _round_up(x, m):
    return _cdiv(x, m) * m


def fasttext_mlp_kernel(x_ref, w1_ref, b1_ref, w2_ref, b2_ref, o_ref):
    # fc1: cast streamed f32 tile to bf16 in-register (no HBM cost) and run the
    # MXU matmul with f32 accumulation.
    x_bf = x_ref[...].astype(jnp.bfloat16)
    w1_bf = w1_ref[...].astype(jnp.bfloat16)
    h = jnp.dot(x_bf, w1_bf, preferred_element_type=jnp.float32)
    # bias + ReLU in f32 on the VPU.
    h = jnp.maximum(h + b1_ref[...], 0.0)
    # dropout(p=0.5): identity in eval/inference mode.
    # TODO(synk): training-mode dropout (pltpu.prng_seed + stateful_bernoulli) not emitted here.
    # fc2: (TB, 128) @ (128, 2) + (1, 2), f32 (negligible FLOPs, under DMA slack).
    out = jnp.dot(h, w2_ref[...], preferred_element_type=jnp.float32)
    o_ref[...] = (out + b2_ref[...]).astype(o_ref.dtype)


def _choose_batch_tile(B, max_tb=2048):
    """Pick a batch tile: multiple of 8, >=2 tiles when B allows, bounded padding."""
    # Even tile count when possible so v7x's 2 TensorCores both stay busy.
    n_tiles = max(2, 2 * _cdiv(B, 2 * max_tb))
    tb = _round_up(_cdiv(B, n_tiles), 8)
    grid_b = _cdiv(B, tb)
    return tb, grid_b


def fasttext_forward(x, w1, b1, w2, b2):
    """Fused fc1 -> ReLU -> (eval dropout) -> fc2.

    x:  (B, E) f32
    w1: (E, H) f32   (stored transposed vs. torch: in_features x out_features)
    b1: (1, H) f32
    w2: (H, C) f32
    b2: (1, C) f32
    returns (B, C) f32
    """
    B, E = x.shape
    H = w1.shape[1]
    C = w2.shape[1]

    TB, grid_b = _choose_batch_tile(B)
    B_pad = grid_b * TB

    # Only the batch axis is padded (at most TB-1 rows, typically <8), and only
    # when needed.  No E padding, no extra dtype materialization.
    if B_pad != B:
        xp = jnp.zeros((B_pad, E), x.dtype).at[:B].set(x)
    else:
        xp = x

    w1f = w1.astype(jnp.float32)
    b1f = b1.astype(jnp.float32)
    w2f = w2.astype(jnp.float32)
    b2f = b2.astype(jnp.float32)

    cost = pl.CostEstimate(
        flops=2 * B_pad * E * H + 2 * B_pad * H * C,
        transcendentals=0,
        bytes_accessed=(B_pad * E * 4          # x (f32, streamed)
                        + E * H * 4            # w1 (f32, resident)
                        + H * 4 + H * C * 4 + C * 4   # b1, w2, b2 (f32)
                        + B_pad * C * 4),      # output (f32)
    )

    out_padded = pl.pallas_call(
        fasttext_mlp_kernel,
        out_shape=jax.ShapeDtypeStruct((B_pad, C), jnp.float32),
        grid_spec=pltpu.PrefetchScalarGridSpec(
            num_scalar_prefetch=0,
            grid=(grid_b,),
            in_specs=[
                # x: one batch tile per grid step (pipelined); full (unpadded) E.
                pl.BlockSpec((TB, E), lambda i: (i, 0)),
                # Weights / biases: constant index maps -> resident in VMEM.
                pl.BlockSpec((E, H), lambda i: (0, 0)),
                pl.BlockSpec((1, H), lambda i: (0, 0)),
                pl.BlockSpec((H, C), lambda i: (0, 0)),
                pl.BlockSpec((1, C), lambda i: (0, 0)),
            ],
            out_specs=pl.BlockSpec((TB, C), lambda i: (i, 0)),
        ),
        compiler_params=pltpu.CompilerParams(
            # Batch tiles are independent -> shard across v7x's 2 TensorCores.
            dimension_semantics=("parallel",),
        ),
        cost_estimate=cost,
    )(xp, w1f, b1f, w2f, b2f)

    return out_padded[:B] if B_pad != B else out_padded


def init_params(key, embedding_dim, hidden=128, n_classes=2):
    """Deterministic PyTorch-style Linear init: U(-1/sqrt(fan_in), 1/sqrt(fan_in))."""
    k1, k2, k3, k4 = jax.random.split(key, 4)
    bound1 = 1.0 / jnp.sqrt(embedding_dim)
    bound2 = 1.0 / jnp.sqrt(hidden)
    # Stored transposed: (in_features, out_features)
    w1 = jax.random.uniform(k1, (embedding_dim, hidden), jnp.float32, -bound1, bound1)
    b1 = jax.random.uniform(k2, (1, hidden), jnp.float32, -bound1, bound1)
    w2 = jax.random.uniform(k3, (hidden, n_classes), jnp.float32, -bound2, bound2)
    b2 = jax.random.uniform(k4, (1, n_classes), jnp.float32, -bound2, bound2)
    return w1, b1, w2, b2


if __name__ == "__main__":
    key = jax.random.PRNGKey(0)
    k_x, k_p = jax.random.split(key)

    batch = 8
    embedding_dim = 32  # synthetic stand-in for w2v_model.vector_size

    x = jax.random.normal(k_x, (batch, embedding_dim), jnp.float32)
    w1, b1, w2, b2 = init_params(k_p, embedding_dim)

    out = fasttext_forward(x, w1, b1, w2, b2)
    out = jax.block_until_ready(out)

    # Reference check in plain JAX (eval-mode forward, f32 end-to-end).
    # The kernel casts x/w1 to bf16 at the MXU input (f32 accumulation), so use
    # a bf16-appropriate tolerance.
    ref = jnp.maximum(x @ w1 + b1, 0.0) @ w2 + b2
    assert out.shape == (batch, 2)
    assert jnp.allclose(out, ref, atol=2e-2, rtol=2e-2)

    print("KERNEL_OK")
</pallas_src>

<mosaic_0001>
module attributes {stable_mosaic.version = 11 : i64} {
  func.func @fasttext_mlp_kernel(%arg0: i32, %arg1: memref<8x32xf32, #tpu.memory_space<vmem>>, %arg2: memref<32x128xf32, #tpu.memory_space<vmem>>, %arg3: memref<1x128xf32, #tpu.memory_space<vmem>>, %arg4: memref<128x2xf32, #tpu.memory_space<vmem>>, %arg5: memref<1x2xf32, #tpu.memory_space<vmem>>, %arg6: memref<8x2xf32, #tpu.memory_space<vmem>>) attributes {dimension_semantics = [#tpu.dimension_semantics<parallel>], iteration_bounds = array<i64: 1>, scalar_prefetch = 0 : i64, scratch_operands = 0 : i64, tpu.core_type = #tpu.core_type<tc>, window_params = [{transform_indices = @transform_0, window_bounds = array<i64: 8, 32>}, {pipeline_mode = #tpu.pipeline_mode<synchronous>, transform_indices = @transform_1, window_bounds = array<i64: 32, 128>}, {pipeline_mode = #tpu.pipeline_mode<synchronous>, transform_indices = @transform_2, window_bounds = array<i64: 1, 128>}, {pipeline_mode = #tpu.pipeline_mode<synchronous>, transform_indices = @transform_3, window_bounds = array<i64: 128, 2>}, {pipeline_mode = #tpu.pipeline_mode<synchronous>, transform_indices = @transform_4, window_bounds = array<i64: 1, 2>}, {transform_indices = @transform_5, window_bounds = array<i64: 8, 2>}]} {
    %c0 = arith.constant 0 : index
    %c0_0 = arith.constant 0 : index
    %0 = vector.load %arg1[%c0, %c0_0] : memref<8x32xf32, #tpu.memory_space<vmem>>, vector<8x32xf32>
    %1 = arith.truncf %0 : vector<8x32xf32> to vector<8x32xbf16>
    %c0_1 = arith.constant 0 : index
    %c0_2 = arith.constant 0 : index
    %2 = vector.load %arg2[%c0_1, %c0_2] : memref<32x128xf32, #tpu.memory_space<vmem>>, vector<32x128xf32>
    %3 = arith.truncf %2 : vector<32x128xf32> to vector<32x128xbf16>
    %cst = arith.constant dense<0.000000e+00> : vector<8x128xf32>
    %4 = tpu.matmul %1, %3, %cst {dimension_numbers = #tpu.dot_dimension_numbers<[1], [0], [0], [1], [0, 0, 1, 1], [], []>} : vector<8x32xbf16>, vector<32x128xbf16>, vector<8x128xf32> -> vector<8x128xf32>
    %c0_3 = arith.constant 0 : index
    %c0_4 = arith.constant 0 : index
    %5 = vector.load %arg3[%c0_3, %c0_4] : memref<1x128xf32, #tpu.memory_space<vmem>>, vector<1x128xf32>
    %6 = vector.broadcast %5 : vector<1x128xf32> to vector<8x128xf32>
    %7 = arith.addf %4, %6 : vector<8x128xf32>
    %cst_5 = arith.constant 0.000000e+00 : f32
    %8 = vector.broadcast %cst_5 : f32 to vector<8x128xf32>
    %9 = arith.maximumf %7, %8 : vector<8x128xf32>
    %c0_6 = arith.constant 0 : index
    %c0_7 = arith.constant 0 : index
    %10 = vector.load %arg4[%c0_6, %c0_7] : memref<128x2xf32, #tpu.memory_space<vmem>>, vector<128x2xf32>
    %cst_8 = arith.constant dense<0.000000e+00> : vector<8x2xf32>
    %11 = tpu.matmul %9, %10, %cst_8 {dimension_numbers = #tpu.dot_dimension_numbers<[1], [0], [0], [1], [0, 0, 1, 1], [], []>} : vector<8x128xf32>, vector<128x2xf32>, vector<8x2xf32> -> vector<8x2xf32>
    %c0_9 = arith.constant 0 : index
    %c0_10 = arith.constant 0 : index
    %12 = vector.load %arg5[%c0_9, %c0_10] : memref<1x2xf32, #tpu.memory_space<vmem>>, vector<1x2xf32>
    %13 = vector.broadcast %12 : vector<1x2xf32> to vector<8x2xf32>
    %14 = arith.addf %11, %13 : vector<8x2xf32>
    %c0_11 = arith.constant 0 : index
    %c0_12 = arith.constant 0 : index
    %15 = vector.load %arg6[%c0_11, %c0_12] : memref<8x2xf32, #tpu.memory_space<vmem>>, vector<8x2xf32>
    tpu.vector_store %arg6[%c0_11, %c0_12], %14 {strides = array<i32>} : memref<8x2xf32, #tpu.memory_space<vmem>>, vector<8x2xf32>,
    return
  }
  func.func @transform_0(%arg0: i32) -> (i32, i32) {
    %c0_i32 = arith.constant 0 : i32
    %c0_i32_0 = arith.constant 0 : i32
    return %arg0, %c0_i32 : i32, i32
  }
  func.func @transform_1(%arg0: i32) -> (i32, i32) {
    %c0_i32 = arith.constant 0 : i32
    %c0_i32_0 = arith.constant 0 : i32
    %c0_i32_1 = arith.constant 0 : i32
    return %c0_i32, %c0_i32_0 : i32, i32
  }
  func.func @transform_2(%arg0: i32) -> (i32, i32) {
    %c0_i32 = arith.constant 0 : i32
    %c0_i32_0 = arith.constant 0 : i32
    %c0_i32_1 = arith.constant 0 : i32
    return %c0_i32, %c0_i32_0 : i32, i32
  }
  func.func @transform_3(%arg0: i32) -> (i32, i32) {
    %c0_i32 = arith.constant 0 : i32
    %c0_i32_0 = arith.constant 0 : i32
    %c0_i32_1 = arith.constant 0 : i32
    return %c0_i32, %c0_i32_0 : i32, i32
  }
  func.func @transform_4(%arg0: i32) -> (i32, i32) {
    %c0_i32 = arith.constant 0 : i32
    %c0_i32_0 = arith.constant 0 : i32
    %c0_i32_1 = arith.constant 0 : i32
    return %c0_i32, %c0_i32_0 : i32, i32
  }
  func.func @transform_5(%arg0: i32) -> (i32, i32) {
    %c0_i32 = arith.constant 0 : i32
    %c0_i32_0 = arith.constant 0 : i32
    return %arg0, %c0_i32 : i32, i32
  }
}

</mosaic_0001>

<llo_original>
// kernel: tpu_custom_call.1
$region0: #{tpu_custom_call.1}
  #allocation0 [shape = 'u32[]', space=smem, size = 0x4, offset = 0x4, fixed_abs, tag = 'smem constant byte address 0x4 - core index']
  #allocation1 [shape = 'u32[72,128]{1,0:T(1,128)}', space=vmem, size = 0x9000, scoped, tag = 'internal scratch']
  %s0 = inlined_call_operand.vmem [shape: f32[8,32], index: 0, kind: input, shape index: {}]
  %s1 = inlined_call_operand.vmem [shape: f32[32,128], index: 1, kind: input, shape index: {}]
  %s2 = inlined_call_operand.vmem [shape: f32[1,128], index: 2, kind: input, shape index: {}]
  %s3 = inlined_call_operand.vmem [shape: f32[128,2], index: 3, kind: input, shape index: {}]
  %s4 = inlined_call_operand.vmem [shape: f32[1,2], index: 4, kind: input, shape index: {}]
  %s5 = inlined_call_operand.vmem [shape: f32[8,2], index: 5, kind: output, shape index: {}]
  %s6 = sld [smem:[#allocation0]]
  $region30: #{tpu_custom_call.1} parent=0
    _
  %s8 = ssub.s32 1, %s6
  %s9 = scalar_select 0, %s8, %s6
  // Predicated region
  $region2: #{tpu_custom_call.1} parent=0 // pred_check
    _
  $region3: #{tpu_custom_call.1} parent=0 // pred_check_branch
    %11 = sbr.rel (0) target = $region5
  $region4: #{tpu_custom_call.1} parent=0 // pred_region
    _
  $region5: #{tpu_custom_call.1} parent=0 // pred_fallthru
    _
  // Predicated region
  $region6: #{tpu_custom_call.1} parent=0 // pred_check
    _
  $region7: #{tpu_custom_call.1} parent=0 // pred_check_branch
    %13 = sbr.rel (0) target = $region9
  $region8: #{tpu_custom_call.1} parent=0 // pred_region
    _
  $region9: #{tpu_custom_call.1} parent=0 // pred_fallthru
    _
  // Predicated region
  $region10: #{tpu_custom_call.1} parent=0 // pred_check
    _
  $region11: #{tpu_custom_call.1} parent=0 // pred_check_branch
    %15 = sbr.rel (0) target = $region13
  $region12: #{tpu_custom_call.1} parent=0 // pred_region
    _
  $region13: #{tpu_custom_call.1} parent=0 // pred_fallthru
    _
  // Predicated region
  $region14: #{tpu_custom_call.1} parent=0 // pred_check
    _
  $region15: #{tpu_custom_call.1} parent=0 // pred_check_branch
    %17 = sbr.rel (0) target = $region17
  $region16: #{tpu_custom_call.1} parent=0 // pred_region
    _
  $region17: #{tpu_custom_call.1} parent=0 // pred_fallthru
    _
  // Predicated region
  $region18: #{tpu_custom_call.1} parent=0 // pred_check
    _
  $region19: #{tpu_custom_call.1} parent=0 // pred_check_branch
    %19 = sbr.rel (0) target = $region21
  $region20: #{tpu_custom_call.1} parent=0 // pred_region
    _
  $region21: #{tpu_custom_call.1} parent=0 // pred_fallthru
    _
  %v21 = vld [vmem:[%s0] sm:$0xff]
  %v22 = vpack.c.bf16 %v21, %v21
  %v23 = vld [vmem:[%s1] sm:$0xff]
  %v24 = vld [vmem:[%s1 + $0x8] sm:$0xff]
  %v25 = vld [vmem:[%s1 + $0x10] sm:$0xff]
  %v26 = vld [vmem:[%s1 + $0x18] sm:$0xff]
  %v27 = vpack.c.bf16 %v24, %v23
  %v28 = vpack.c.bf16 %v26, %v25
  %v29 = vld [vmem:[%s2] sm:$0x1]
  %v31 = vperm.slane %v29, 0
  %vm33 = vcmask 261120
  %v35 = vsel %vm33, %v22, 0
  %37 = vmatpush.bf16.msra.mxu0 0
  %38 = vmatpush.bf16.msra.mxu0 0
  %39 = vmatpush.bf16.msra.mxu0 0
  %40 = vmatpush.bf16.msra.mxu0 0
  %41 = vmatpush.bf16.msra.mxu0 0
  %42 = vmatpush.bf16.msra.mxu0 0
  %43 = vmatpush.bf16.msra.mxu0 %v28
  %44 = vmatpush.bf16.msra.mxu0 %v27
  %45 = vmatmul.bf16.gmra.mxu0 %v35
  %v46 = vpop.f32.mrf.mxu0
  %v47 = vadd.f32 %v31, %v46
  %v48 = vpop.f32.mrf.mxu0
  %49 = vdwg.mxu0
  %v50 = vmax.f32 %v47, 0.0
  %v51 = vld [vmem:[%s3] sm:$0xff]
  %v52 = vld [vmem:[%s3 + $0x8] sm:$0xff]
  %v53 = vld [vmem:[%s3 + $0x10] sm:$0xff]
  %v54 = vld [vmem:[%s3 + $0x18] sm:$0xff]
  %v55 = vld [vmem:[%s3 + $0x20] sm:$0xff]
  %v56 = vld [vmem:[%s3 + $0x28] sm:$0xff]
  %v57 = vld [vmem:[%s3 + $0x30] sm:$0xff]
  %v58 = vld [vmem:[%s3 + $0x38] sm:$0xff]
  %v59 = vld [vmem:[%s3 + $0x40] sm:$0xff]
  %v60 = vld [vmem:[%s3 + $0x48] sm:$0xff]
  %v61 = vld [vmem:[%s3 + $0x50] sm:$0xff]
  %v62 = vld [vmem:[%s3 + $0x58] sm:$0xff]
  %v63 = vld [vmem:[%s3 + $0x60] sm:$0xff]
  %v64 = vld [vmem:[%s3 + $0x68] sm:$0xff]
  %v65 = vld [vmem:[%s3 + $0x70] sm:$0xff]
  %v66 = vld [vmem:[%s3 + $0x78] sm:$0xff]
  %v67 = vld [vmem:[%s4] sm:$0x1]
  %v69 = vperm.slane %v67, 0
  %71 = vmatpush.msra.mxu0 %v66
  %72 = vmatpush.msra.mxu0 %v65
  %73 = vmatpush.msra.mxu0 %v64
  %74 = vmatpush.msra.mxu0 %v63
  %75 = vmatpush.msra.mxu0 %v62
  %76 = vmatpush.msra.mxu0 %v61
  %77 = vmatpush.msra.mxu0 %v60
  %78 = vmatpush.msra.mxu0 %v59
  %79 = vmatpush.msra.mxu0 %v58
  %80 = vmatpush.msra.mxu0 %v57
  %81 = vmatpush.msra.mxu0 %v56
  %82 = vmatpush.msra.mxu0 %v55
  %83 = vmatpush.msra.mxu0 %v54
  %84 = vmatpush.msra.mxu0 %v53
  %85 = vmatpush.msra.mxu0 %v52
  %86 = vmatpush.msra.mxu0 %v51
  %87 = vmatmul.f32.gmra.mxu0 %v50
  %v88 = vpop.f32.mrf.mxu0
  %v89 = vadd.f32 %v69, %v88
  %90 = vdwg.mxu0
  %vm91 = vcmask 15360
  %92 = vst.msk [vmem:[%s5] sm:$0xff] %vm91, %v89
  // Predicated region
  $region22: #{tpu_custom_call.1} parent=0 // pred_check
    _
  $region23: #{tpu_custom_call.1} parent=0 // pred_check_branch
    %94 = sbr.rel (0) target = $region25
  $region24: #{tpu_custom_call.1} parent=0 // pred_region
    _
  $region25: #{tpu_custom_call.1} parent=0 // pred_fallthru
    _
  // Predicated region
  $region26: #{tpu_custom_call.1} parent=0 // pred_check
    _
  $region27: #{tpu_custom_call.1} parent=0 // pred_check_branch
    %96 = sbr.rel (0) target = $region29
  $region28: #{tpu_custom_call.1} parent=0 // pred_region
    _
  $region29: #{tpu_custom_call.1} parent=0 // pred_fallthru
    _

</llo_original>
